<compile_context>
chip_gen: v7x
topology: tpu7x:2x2x1
jax: 0.10.0
libtpu: 0.0.40
codegen_flags: <defaults>
</compile_context>

<pallas_src>
import functools

import jax
import jax.numpy as jnp
from jax.experimental import pallas as pl
from jax.experimental.pallas import tpu as pltpu


# ---------------------------------------------------------------------------
# Helpers / tiling heuristics
# ---------------------------------------------------------------------------
def _round_up(x, m):
    return ((x + m - 1) // m) * m


def _cdiv(a, b):
    return -(-a // b)


def _vmem_capacity_bytes():
    """Physical VMEM of this TPU generation (fallback: 64 MiB, v7x-sized)."""
    try:
        cap = int(pltpu.get_tpu_info().vmem_capacity_bytes)
        if cap > 0:
            return cap
    except Exception:
        pass
    return 64 * 1024 * 1024


def _choose_tiles(K, Cout, Mi, N, *, block_budget, dtype_bytes):
    """Pick (tile_k, n_kt, Kp, tile_m, Mip, n_mt) for the conv kernel."""
    # Keep the contraction unblocked whenever double-buffered weights fit
    # comfortably: the weight block index is then constant (DMA'd once for the
    # whole kernel) and K needs no zero-padding.
    if 2 * Cout * K * dtype_bytes <= block_budget // 4:
        tile_k, n_kt = K, 1
    else:
        # K must be blocked: choose tile_k near K/n_kt (multiple of 128) so
        # that the zero-padding of the contraction is minimal.
        n_kt = _cdiv(K, 512)
        tile_k = _round_up(_cdiv(K, n_kt), 128)
        n_kt = _cdiv(K, tile_k)
    Kp = tile_k * n_kt

    def vmem_use(tm):
        # double-buffered A / W / Y blocks (compute dtype) + f32 accumulator
        return (2 * tile_k * tm * dtype_bytes      # A tile
                + 2 * Cout * tile_k * dtype_bytes  # W tile
                + 2 * Cout * tm * dtype_bytes      # Y tile
                + Cout * tm * 4)                   # acc scratch

    tile_m = 1024
    while tile_m > 128 and vmem_use(tile_m) > block_budget:
        tile_m //= 2
    # do not over-pad small images
    tile_m = min(tile_m, max(128, _round_up(Mi, 128)))
    Mip = _round_up(Mi, tile_m)
    n_mt = Mip // tile_m

    # v7x has two TensorCores: make sure the "parallel" grid axes provide at
    # least two steps so both cores get work.
    while N * n_mt < 2 and tile_m > 128:
        tile_m = max(128, _round_up(tile_m // 2, 128))
        Mip = _round_up(Mi, tile_m)
        n_mt = Mip // tile_m
    return tile_k, n_kt, Kp, tile_m, Mip, n_mt


# ---------------------------------------------------------------------------
# Kernel 1: conv-as-matmul (bf16 MXU, f32 acc) + bias + fused BN partial stats
# ---------------------------------------------------------------------------
def conv_bias_stats_kernel(a_ref, w_ref, b_ref, y_ref, stats_ref, acc_ref,
                           *, mi, tile_m, n_kt):
    # NOTE: program_id reads are hoisted to the kernel top level; binding them
    # inside a pl.when branch leaves a raw program_id primitive inside the
    # lax.cond jaxpr, which has no interpret/CPU lowering rule.
    j = pl.program_id(1)      # pixel-tile index
    k = pl.program_id(2)      # contraction-tile index

    @pl.when(k == 0)
    def _():
        acc_ref[...] = jnp.zeros_like(acc_ref)

    # (Cout, tile_k) @ (tile_k, tile_m) -> (Cout, tile_m); lane axis = pixels.
    acc_ref[...] += jnp.dot(w_ref[...], a_ref[0],
                            preferred_element_type=jnp.float32)

    @pl.when(k == n_kt - 1)
    def _():
        y32 = acc_ref[...] + b_ref[...]                 # (Cout, tile_m), f32
        y_ref[0] = y32.astype(y_ref.dtype)
        # Partial BatchNorm statistics for this pixel tile, taken from the f32
        # accumulator.  Padded pixel columns (col >= mi) are masked out so the
        # batch statistics stay exact (divisor is N*Ho*Wo).
        col = j * tile_m + jax.lax.broadcasted_iota(jnp.int32, (1, tile_m), 1)
        yv = jnp.where(col < mi, y32, 0.0)
        s1 = jnp.sum(yv, axis=1)                        # (Cout,)
        s2 = jnp.sum(yv * yv, axis=1)                   # (Cout,)
        # single lane-dense (2, Cout) store instead of two width-1 stores
        stats_ref[0, 0] = jnp.stack([s1, s2], axis=0)


# ---------------------------------------------------------------------------
# Kernel 2: normalize (+ ReLU), large lane-dense blocks
# ---------------------------------------------------------------------------
def bn_relu_kernel(y_ref, scale_ref, shift_ref, o_ref, *, apply_relu):
    out = y_ref[...].astype(jnp.float32) * scale_ref[...] + shift_ref[...]
    if apply_relu:
        out = jnp.maximum(out, 0.0)
    o_ref[...] = out.astype(o_ref.dtype)


# ---------------------------------------------------------------------------
# Wrapper
# ---------------------------------------------------------------------------
def conv2d_block_forward(x, weight, bias, gamma, beta, *, stride, padding,
                         eps=1e-3, act=True, compute_dtype=jnp.bfloat16):
    """Conv2d(cin,cout,k,stride,padding,bias) + BatchNorm2d(batch stats) + ReLU.

    x: (N, Cin, H, W) f32 NCHW.  weight: (Cout, Cin, Kh, Kw).
    bias/gamma/beta: (Cout,).  Returns (N, Cout, Ho, Wo) f32.
    """
    N, Cin, H, W = x.shape
    Cout, _, Kh, Kw = weight.shape
    Ho = (H + 2 * padding - Kh) // stride + 1
    Wo = (W + 2 * padding - Kw) // stride + 1
    Mi = Ho * Wo                      # pixels per image
    K = Cin * Kh * Kw

    dtype_bytes = jnp.dtype(compute_dtype).itemsize
    vmem_cap = _vmem_capacity_bytes()
    vmem_limit = min(int(vmem_cap * 0.9), 96 * 1024 * 1024)
    block_budget = int(vmem_limit * 0.65)

    tile_k, n_kt, Kp, tile_m, Mip, n_mt = _choose_tiles(
        K, Cout, Mi, N, block_budget=block_budget, dtype_bytes=dtype_bytes)

    # ---- glue: transposed im2col in the compute dtype (pixels on lanes) ----
    # TODO(synk): fuse this gather into kernel 1 (halo DMA of the padded input)
    # to remove the ~Kh*Kw x HBM blow-up of A.
    xp = jnp.pad(x.astype(compute_dtype),
                 ((0, 0), (0, 0), (padding, padding), (padding, padding)))
    taps = []
    for kh in range(Kh):
        for kw in range(Kw):
            taps.append(xp[:, :, kh:kh + stride * Ho:stride,
                               kw:kw + stride * Wo:stride])      # (N,Cin,Ho,Wo)
    A = jnp.stack(taps, axis=2).reshape(N, K, Mi)    # K ordered (ci, kh, kw)
    if Kp != K or Mip != Mi:
        A = jnp.pad(A, ((0, 0), (0, Kp - K), (0, Mip - Mi)))

    Wt = weight.reshape(Cout, K).astype(compute_dtype)
    if Kp != K:
        Wt = jnp.pad(Wt, ((0, 0), (0, Kp - K)))
    b2 = bias.reshape(Cout, 1).astype(jnp.float32)

    # ---- kernel 1: conv matmul + bias + per-tile BN partial sums ------------
    y3, stats = pl.pallas_call(
        functools.partial(conv_bias_stats_kernel,
                          mi=Mi, tile_m=tile_m, n_kt=n_kt),
        out_shape=(
            jax.ShapeDtypeStruct((N, Cout, Mip), compute_dtype),
            jax.ShapeDtypeStruct((N, n_mt, 2, Cout), jnp.float32),
        ),
        grid_spec=pltpu.PrefetchScalarGridSpec(
            num_scalar_prefetch=0,
            grid=(N, n_mt, n_kt),
            in_specs=[
                pl.BlockSpec((1, tile_k, tile_m), lambda n, j, k: (n, k, j)),
                pl.BlockSpec((Cout, tile_k), lambda n, j, k: (0, k)),
                pl.BlockSpec((Cout, 1), lambda n, j, k: (0, 0)),
            ],
            out_specs=(
                pl.BlockSpec((1, Cout, tile_m), lambda n, j, k: (n, 0, j)),
                pl.BlockSpec((1, 1, 2, Cout), lambda n, j, k: (n, j, 0, 0)),
            ),
            scratch_shapes=[pltpu.VMEM((Cout, tile_m), jnp.float32)],
        ),
        compiler_params=pltpu.CompilerParams(
            dimension_semantics=("parallel", "parallel", "arbitrary"),
            vmem_limit_bytes=vmem_limit,
        ),
    )(A, Wt, b2)

    # ---- finalize batch statistics (tiny per-channel math, plain JAX) -------
    cnt = float(N * Mi)
    s = jnp.sum(stats, axis=(0, 1))                       # (2, Cout)
    mean = s[0] / cnt
    # single-pass variance; clamp at 0 to guard against f32 cancellation
    var = jnp.maximum(s[1] / cnt - mean * mean, 0.0)
    inv = jax.lax.rsqrt(var + eps)
    g32 = gamma.astype(jnp.float32)
    scale = (g32 * inv).reshape(Cout, 1)
    shift = (beta.astype(jnp.float32) - mean * g32 * inv).reshape(Cout, 1)

    # ---- kernel 2: normalize (+ ReLU), biggest lane-dense block that fits ---
    m_steps = Mip // tile_m
    want_steps = 2 if N * m_steps >= 2 else 1             # keep v7x 2-TC busy
    tile_m2 = tile_m
    for f in range(m_steps, 0, -1):
        cand = f * tile_m
        if (Mip % cand == 0
                and (2 * dtype_bytes + 2 * 4) * Cout * cand <= block_budget
                and N * (Mip // cand) >= want_steps):
            tile_m2 = cand
            break
    n_mt2 = Mip // tile_m2

    out3 = pl.pallas_call(
        functools.partial(bn_relu_kernel, apply_relu=act),
        out_shape=jax.ShapeDtypeStruct((N, Cout, Mip), jnp.float32),
        grid_spec=pltpu.PrefetchScalarGridSpec(
            num_scalar_prefetch=0,
            grid=(N, n_mt2),
            in_specs=[
                pl.BlockSpec((1, Cout, tile_m2), lambda n, j: (n, 0, j)),
                pl.BlockSpec((Cout, 1), lambda n, j: (0, 0)),
                pl.BlockSpec((Cout, 1), lambda n, j: (0, 0)),
            ],
            out_specs=pl.BlockSpec((1, Cout, tile_m2), lambda n, j: (n, 0, j)),
        ),
        compiler_params=pltpu.CompilerParams(
            dimension_semantics=("parallel", "parallel"),
            vmem_limit_bytes=vmem_limit,
        ),
    )(y3, scale, shift)

    if Mip != Mi:
        out3 = out3[:, :, :Mi]
    # channel-major already -> plain reshape, no transpose needed
    return out3.reshape(N, Cout, Ho, Wo)


# ---------------------------------------------------------------------------
# Pure-JAX reference (validation only)
# ---------------------------------------------------------------------------
def reference(x, weight, bias, gamma, beta, *, stride, padding, eps=1e-3, act=True):
    y = jax.lax.conv_general_dilated(
        x, weight, window_strides=(stride, stride),
        padding=((padding, padding), (padding, padding)),
        dimension_numbers=("NCHW", "OIHW", "NCHW"))
    y = y + bias.reshape(1, -1, 1, 1)
    mean = jnp.mean(y, axis=(0, 2, 3), keepdims=True)
    var = jnp.mean((y - mean) ** 2, axis=(0, 2, 3), keepdims=True)
    out = (y - mean) * jax.lax.rsqrt(var + eps) * gamma.reshape(1, -1, 1, 1) \
          + beta.reshape(1, -1, 1, 1)
    if act:
        out = jnp.maximum(out, 0.0)
    return out


if __name__ == "__main__":
    key = jax.random.PRNGKey(0)
    kx, kw_, kb, kg, kbt = jax.random.split(key, 5)

    N, Cin, H, W = 2, 4, 16, 16
    Cout, Kh, Kw = 8, 3, 3
    x = jax.random.normal(kx, (N, Cin, H, W), dtype=jnp.float32)
    weight = jax.random.normal(kw_, (Cout, Cin, Kh, Kw), dtype=jnp.float32) * 0.1
    bias = jax.random.normal(kb, (Cout,), dtype=jnp.float32) * 0.1
    gamma = 1.0 + 0.1 * jax.random.normal(kg, (Cout,), dtype=jnp.float32)
    beta = 0.1 * jax.random.normal(kbt, (Cout,), dtype=jnp.float32)

    # 1) f32 compute path, Conv(3x3, s=1, p=1) + BN + ReLU -- tight check.
    out = conv2d_block_forward(x, weight, bias, gamma, beta, stride=1,
                               padding=1, eps=1e-3, act=True,
                               compute_dtype=jnp.float32)
    out = jax.block_until_ready(out)
    ref = reference(x, weight, bias, gamma, beta, stride=1, padding=1,
                    eps=1e-3, act=True)
    assert out.shape == (N, Cout, 16, 16)
    assert jnp.allclose(out, ref, rtol=2e-3, atol=2e-3), \
        float(jnp.max(jnp.abs(out - ref)))

    # 2) f32, stride=2, no ReLU -- exercises padded-pixel masking of BN stats.
    out2 = conv2d_block_forward(x, weight, bias, gamma, beta, stride=2,
                                padding=1, eps=1e-3, act=False,
                                compute_dtype=jnp.float32)
    out2 = jax.block_until_ready(out2)
    ref2 = reference(x, weight, bias, gamma, beta, stride=2, padding=1,
                     eps=1e-3, act=False)
    assert out2.shape == (N, Cout, 8, 8)
    assert jnp.allclose(out2, ref2, rtol=2e-3, atol=2e-3), \
        float(jnp.max(jnp.abs(out2 - ref2)))

    # 3) default bf16 compute path (MXU peak) -- loose tolerance vs f32 ref.
    out3 = conv2d_block_forward(x, weight, bias, gamma, beta, stride=1,
                                padding=1, eps=1e-3, act=True)
    out3 = jax.block_until_ready(out3)
    assert out3.shape == (N, Cout, 16, 16)
    assert jnp.allclose(out3, ref, rtol=6e-2, atol=6e-2), \
        float(jnp.max(jnp.abs(out3 - ref)))

    print("KERNEL_OK")
</pallas_src>

<mosaic_0001>
module attributes {stable_mosaic.version = 11 : i64} {
  func.func @conv_bias_stats_kernel(%arg0: i32, %arg1: i32, %arg2: i32, %arg3: memref<1x36x256xf32, #tpu.memory_space<vmem>>, %arg4: memref<8x36xf32, #tpu.memory_space<vmem>>, %arg5: memref<8x1xf32, #tpu.memory_space<vmem>>, %arg6: memref<1x8x256xf32, #tpu.memory_space<vmem>>, %arg7: memref<1x1x2x8xf32, #tpu.memory_space<vmem>>, %arg8: memref<8x256xf32, #tpu.memory_space<vmem>>) attributes {dimension_semantics = [#tpu.dimension_semantics<parallel>, #tpu.dimension_semantics<parallel>, #tpu.dimension_semantics<arbitrary>], iteration_bounds = array<i64: 2, 1, 1>, scalar_prefetch = 0 : i64, scratch_operands = 1 : i64, tpu.core_type = #tpu.core_type<tc>, window_params = [{transform_indices = @transform_0, window_bounds = array<i64: 1, 36, 256>}, {transform_indices = @transform_1, window_bounds = array<i64: 8, 36>}, {pipeline_mode = #tpu.pipeline_mode<synchronous>, transform_indices = @transform_2, window_bounds = array<i64: 8, 1>}, {transform_indices = @transform_3, window_bounds = array<i64: 1, 8, 256>}, {transform_indices = @transform_4, window_bounds = array<i64: 1, 1, 2, 8>}]} {
    %c0_i32 = arith.constant 0 : i32
    %0 = arith.cmpi eq, %arg2, %c0_i32 : i32
    %1 = arith.extui %0 : i1 to i32
    %c0_i32_0 = arith.constant 0 : i32
    %2 = arith.cmpi ne, %1, %c0_i32_0 : i32
    scf.if %2 {
      %cst_11 = arith.constant 0.000000e+00 : f32
      %13 = vector.broadcast %cst_11 : f32 to vector<8x256xf32>
      %c0_12 = arith.constant 0 : index
      %c0_13 = arith.constant 0 : index
      %14 = vector.load %arg8[%c0_12, %c0_13] : memref<8x256xf32, #tpu.memory_space<vmem>>, vector<8x256xf32>
      tpu.vector_store %arg8[%c0_12, %c0_13], %13 {strides = array<i32>} : memref<8x256xf32, #tpu.memory_space<vmem>>, vector<8x256xf32>,
    } else {
    }
    %c0 = arith.constant 0 : index
    %c0_1 = arith.constant 0 : index
    %3 = vector.load %arg8[%c0, %c0_1] : memref<8x256xf32, #tpu.memory_space<vmem>>, vector<8x256xf32>
    %c0_2 = arith.constant 0 : index
    %c0_3 = arith.constant 0 : index
    %4 = vector.load %arg4[%c0_2, %c0_3] : memref<8x36xf32, #tpu.memory_space<vmem>>, vector<8x36xf32>
    %c0_4 = arith.constant 0 : index
    %c0_5 = arith.constant 0 : index
    %c0_6 = arith.constant 0 : index
    %5 = vector.load %arg3[%c0_4, %c0_5, %c0_6] : memref<1x36x256xf32, #tpu.memory_space<vmem>>, vector<1x36x256xf32>
    %6 = vector.shape_cast %5 : vector<1x36x256xf32> to vector<36x256xf32>
    %cst = arith.constant dense<0.000000e+00> : vector<8x256xf32>
    %7 = tpu.matmul %4, %6, %cst {dimension_numbers = #tpu.dot_dimension_numbers<[1], [0], [0], [1], [0, 0, 1, 1], [], []>} : vector<8x36xf32>, vector<36x256xf32>, vector<8x256xf32> -> vector<8x256xf32>
    %8 = arith.addf %3, %7 : vector<8x256xf32>
    %c0_7 = arith.constant 0 : index
    %c0_8 = arith.constant 0 : index
    %9 = vector.load %arg8[%c0_7, %c0_8] : memref<8x256xf32, #tpu.memory_space<vmem>>, vector<8x256xf32>
    tpu.vector_store %arg8[%c0_7, %c0_8], %8 {strides = array<i32>} : memref<8x256xf32, #tpu.memory_space<vmem>>, vector<8x256xf32>,
    %c0_i32_9 = arith.constant 0 : i32
    %10 = arith.cmpi eq, %arg2, %c0_i32_9 : i32
    %11 = arith.extui %10 : i1 to i32
    %c0_i32_10 = arith.constant 0 : i32
    %12 = arith.cmpi ne, %11, %c0_i32_10 : i32
    scf.if %12 {
      %c0_11 = arith.constant 0 : index
      %c0_12 = arith.constant 0 : index
      %13 = vector.load %arg8[%c0_11, %c0_12] : memref<8x256xf32, #tpu.memory_space<vmem>>, vector<8x256xf32>
      %c0_13 = arith.constant 0 : index
      %c0_14 = arith.constant 0 : index
      %14 = vector.load %arg5[%c0_13, %c0_14] : memref<8x1xf32, #tpu.memory_space<vmem>>, vector<8x1xf32>
      %15 = vector.broadcast %14 : vector<8x1xf32> to vector<8x256xf32>
      %16 = arith.addf %13, %15 : vector<8x256xf32>
      %c0_15 = arith.constant 0 : index
      %c0_16 = arith.constant 0 : index
      %c0_17 = arith.constant 0 : index
      %17 = vector.load %arg6[%c0_15, %c0_16, %c0_17] : memref<1x8x256xf32, #tpu.memory_space<vmem>>, vector<1x8x256xf32>
      %18 = vector.shape_cast %17 : vector<1x8x256xf32> to vector<8x256xf32>
      %19 = vector.shape_cast %16 : vector<8x256xf32> to vector<1x8x256xf32>
      tpu.vector_store %arg6[%c0_15, %c0_16, %c0_17], %19 {strides = array<i32>} : memref<1x8x256xf32, #tpu.memory_space<vmem>>, vector<1x8x256xf32>,
      %c256_i32 = arith.constant 256 : i32
      %20 = arith.muli %arg1, %c256_i32 : i32
      %21 = tpu.iota {dimensions = array<i32: 1>} : vector<1x256xi32>
      %22 = vector.broadcast %20 : i32 to vector<1x256xi32>
      %23 = arith.addi %22, %21 : vector<1x256xi32>
      %c256_i32_18 = arith.constant 256 : i32
      %24 = vector.broadcast %c256_i32_18 : i32 to vector<1x256xi32>
      %25 = arith.cmpi slt, %23, %24 : vector<1x256xi32>
      %cst_19 = arith.constant 0.000000e+00 : f32
      %26 = vector.shape_cast %25 : vector<1x256xi1> to vector<1x256xi1>
      %27 = vector.broadcast %26 : vector<1x256xi1> to vector<8x256xi1>
      %28 = vector.broadcast %cst_19 : f32 to vector<8x256xf32>
      %29 = arith.select %27, %16, %28 : vector<8x256xi1>, vector<8x256xf32>
      %cst_20 = arith.constant dense<0.000000e+00> : vector<8xf32>
      %30 = vector.multi_reduction <add>, %29, %cst_20 [1] : vector<8x256xf32> to vector<8xf32>
      %31 = arith.mulf %29, %29 : vector<8x256xf32>
      %cst_21 = arith.constant dense<0.000000e+00> : vector<8xf32>
      %32 = vector.multi_reduction <add>, %31, %cst_21 [1] : vector<8x256xf32> to vector<8xf32>
      %33 = vector.shape_cast %30 : vector<8xf32> to vector<1x8xf32>
      %34 = vector.shape_cast %32 : vector<8xf32> to vector<1x8xf32>
      %35 = tpu.concatenate %33, %34 in 0 : vector<1x8xf32>, vector<1x8xf32> -> vector<2x8xf32>
      %c0_22 = arith.constant 0 : index
      %c0_23 = arith.constant 0 : index
      %c0_24 = arith.constant 0 : index
      %c0_25 = arith.constant 0 : index
      %36 = vector.load %arg7[%c0_22, %c0_23, %c0_24, %c0_25] : memref<1x1x2x8xf32, #tpu.memory_space<vmem>>, vector<1x1x2x8xf32>
      %37 = vector.shape_cast %36 : vector<1x1x2x8xf32> to vector<2x8xf32>
      %38 = vector.shape_cast %35 : vector<2x8xf32> to vector<1x1x2x8xf32>
      tpu.vector_store %arg7[%c0_22, %c0_23, %c0_24, %c0_25], %38 {strides = array<i32>} : memref<1x1x2x8xf32, #tpu.memory_space<vmem>>, vector<1x1x2x8xf32>,
    } else {
    }
    return
  }
  func.func @transform_0(%arg0: i32, %arg1: i32, %arg2: i32) -> (i32, i32, i32) {
    %c0_i32 = arith.constant 0 : i32
    return %arg0, %arg2, %arg1 : i32, i32, i32
  }
  func.func @transform_1(%arg0: i32, %arg1: i32, %arg2: i32) -> (i32, i32) {
    %c0_i32 = arith.constant 0 : i32
    %c0_i32_0 = arith.constant 0 : i32
    return %c0_i32, %arg2 : i32, i32
  }
  func.func @transform_2(%arg0: i32, %arg1: i32, %arg2: i32) -> (i32, i32) {
    %c0_i32 = arith.constant 0 : i32
    %c0_i32_0 = arith.constant 0 : i32
    %c0_i32_1 = arith.constant 0 : i32
    return %c0_i32, %c0_i32_0 : i32, i32
  }
  func.func @transform_3(%arg0: i32, %arg1: i32, %arg2: i32) -> (i32, i32, i32) {
    %c0_i32 = arith.constant 0 : i32
    %c0_i32_0 = arith.constant 0 : i32
    return %arg0, %c0_i32, %arg1 : i32, i32, i32
  }
  func.func @transform_4(%arg0: i32, %arg1: i32, %arg2: i32) -> (i32, i32, i32, i32) {
    %c0_i32 = arith.constant 0 : i32
    %c0_i32_0 = arith.constant 0 : i32
    %c0_i32_1 = arith.constant 0 : i32
    return %arg0, %arg1, %c0_i32, %c0_i32_0 : i32, i32, i32, i32
  }
}

</mosaic_0001>

<llo_original>
// kernel: tpu_custom_call.1
$region0: #{tpu_custom_call.1}
  #allocation0 [shape = 'u32[]', space=smem, size = 0x4, offset = 0x4, fixed_abs, tag = 'smem constant byte address 0x4 - core index']
  #allocation1 [shape = 'u32[144,128]{1,0:T(1,128)}', space=vmem, size = 0x12000, scoped, tag = 'internal scratch']
  #allocation2 [shape = 'f32[8,256]{1,0:T(8,128)}', space=vmem, size = 0x2000, scoped, tag = 'scratch operand']
  %s0 = inlined_call_operand.vmem [shape: f32[2,36,256], index: 0, kind: input, shape index: {}]
  %s1 = inlined_call_operand.vmem [shape: f32[8,36], index: 1, kind: input, shape index: {}]
  %s2 = inlined_call_operand.vmem [shape: f32[8,1], index: 2, kind: input, shape index: {}]
  %s3 = inlined_call_operand.hbm [shape: f32[2,8,256], index: 3, kind: output, shape index: {0}]
  %s4 = inlined_call_operand.hbm [shape: f32[2,1,2,8], index: 4, kind: output, shape index: {1}]
  %5 = xla_tuple %s3, %s4
  %s6 = sld [smem:[#allocation0]]
  $region61: #{tpu_custom_call.1} parent=0
    _
  %s8 = ssub.s32 1, %s6
  %s9 = scalar_select 0, %s8, %s6
  $region1: #{tpu_custom_call.1} parent=0
    #allocation3 [shape = 'u8[16384]{0}', space=vmem, size = 0x4000, scoped, tag = 'output window, operand 0']
    #allocation4 [shape = 's32[2]{0}', space=sflag, size = 0x8, scoped, tag = 'scoped memory for tpu_custom_call.1']
    #allocation5 [shape = 'u8[2048]{0}', space=vmem, size = 0x800, scoped, tag = 'output window, operand 1']
    #allocation6 [shape = 's32[2]{0}', space=sflag, size = 0x8, scoped, tag = 'scoped memory for tpu_custom_call.1']
    %10 = vsyncpa [#allocation4], 0
    %s11 = scalar_lea.sflag [#allocation4], 1
    %12 = vsyncpa %s11, 0
    %13 = vsyncpa [#allocation6], 0
    %s14 = scalar_lea.sflag [#allocation6], 1
    %15 = vsyncpa %s14, 0
    loop: start=0, step=1, limit=4
    $region2: #{tpu_custom_call.1} parent=1 // loop_pre_header
      _
    $region3: #{tpu_custom_call.1} parent=1 // loop_header
      %s17 = sphi 0, %s21
      %p18 = scmp.ge.s32.totalorder %s17, 4
      %s24 = sphi 0, %s43
      %s25 = sphi 0, %s39
      %s26 = sphi 0, %s35
      %s27 = sphi 0, %s24
      %s28 = sphi 0, %s25
      %s29 = sphi 0, %s26
      %s30 = sphi 0, %s27
      %s31 = sphi 0, %s28
      %s32 = sphi 0, %s29
      %s50 = sphi 0, %s52
      %s53 = sphi 0, %s50
      %s54 = sphi 0, %s53
      %s70 = sphi 0, %s54
      %s76 = sphi 0, %s78
      %s79 = sphi 0, %s76
      %s80 = sphi 0, %s79
      %s96 = sphi 0, %s80
      %s100 = sphi 0, %s100
      %s102 = sphi 0, %s100
      %s103 = sphi 0, %s102
      %s117 = sphi 0, %s103
      %s125 = sphi 0, %s127
      %s128 = sphi 0, %s125
      %s129 = sphi 0, %s128
      %s145 = sphi 0, %s129
      %s153 = sphi 0, %s155
      %s156 = sphi 0, %s153
      %s157 = sphi 0, %s156
      %s173 = sphi 0, %s157
    $region4: #{tpu_custom_call.1} parent=1 // loop_header_branch
      %20 = sbr.rel (%p18) target = $region8
    $region5: #{tpu_custom_call.1} parent=1 // loop_body
      %s22 = ssub.s32 %s17, 1
      %s23 = ssub.s32 %s17, 2
      %s33 = sadd.s32 1, %s26
      %p34 = scmp.ge.s32.totalorder %s33, 1
      %s35 = scalar_select %p34, 0, %s33
      %s36 = sadd.s32 1, %s25
      %s37 = scalar_select %p34, %s36, %s25
      %p38 = scmp.ge.s32.totalorder %s37, 1
      %s39 = scalar_select %p38, 0, %s37
      %s40 = sadd.s32 1, %s24
      %s41 = scalar_select %p38, %s40, %s24
      %p42 = scmp.ge.s32.totalorder %s41, 2
      %s43 = scalar_select %p42, 0, %s41
      %s44 = ssub.s32 %s24, %s43
      %s45 = ssub.s32 %s26, %s35
      %s46 = sor.u32 %s44, %s45
      %s47 = ssub.s32 %s25, %s39
      %s48 = sor.u32 %s46, %s47
      %p49 = scmp.eq.s32.totalorder %s48, 0
      %s51 = sadd.s32 %s50, 1
      %s52 = scalar_select %p49, %s50, %s51
      %p55 = pneg %p49
      %p56 = scmp.eq.s32.totalorder %s17, 1
      %p57 = por %p55, %p56
      %p58 = scmp.ne.s32.totalorder %s50, %s53
      %p59 = scmp.eq.s32.totalorder %s17, 0
      %p60 = por %p58, %p59
      %p61 = scmp.ne.s32.totalorder %s50, %s53
      %p62 = scmp.eq.s32.totalorder %s22, 1
      %p63 = por %p61, %p62
      %p64 = scmp.ne.s32.totalorder %s53, %s54
      %p65 = scmp.eq.s32.totalorder %s22, 0
      %p66 = por %p64, %p65
      %p67 = scmp.ne.s32.totalorder %s53, %s54
      %p68 = scmp.eq.s32.totalorder %s23, 1
      %p69 = por %p67, %p68
      %p71 = scmp.ne.s32.totalorder %s54, %s70
      %p72 = scmp.eq.s32.totalorder %s23, 0
      %p73 = por %p71, %p72
      %s74 = ssub.s32 %s26, %s35
      %p75 = scmp.eq.s32.totalorder %s74, 0
      %s77 = sadd.s32 %s76, 1
      %s78 = scalar_select %p75, %s76, %s77
      %p81 = pneg %p75
      %p82 = scmp.eq.s32.totalorder %s17, 1
      %p83 = por %p81, %p82
      %p84 = scmp.ne.s32.totalorder %s76, %s79
      %p85 = scmp.eq.s32.totalorder %s17, 0
      %p86 = por %p84, %p85
      %p87 = scmp.ne.s32.totalorder %s76, %s79
      %p88 = scmp.eq.s32.totalorder %s22, 1
      %p89 = por %p87, %p88
      %p90 = scmp.ne.s32.totalorder %s79, %s80
      %p91 = scmp.eq.s32.totalorder %s22, 0
      %p92 = por %p90, %p91
      %p93 = scmp.ne.s32.totalorder %s79, %s80
      %p94 = scmp.eq.s32.totalorder %s23, 1
      %p95 = por %p93, %p94
      %p97 = scmp.ne.s32.totalorder %s80, %s96
      %p98 = scmp.eq.s32.totalorder %s23, 0
      %p99 = por %p97, %p98
      %s101 = sadd.s32 %s100, 1
      %p104 = scmp.eq.s32.totalorder %s17, 1
      %p105 = scmp.ne.s32.totalorder %s100, %s102
      %p106 = scmp.eq.s32.totalorder %s17, 0
      %p107 = por %p105, %p106
      %p108 = scmp.ne.s32.totalorder %s100, %s102
      %p109 = scmp.eq.s32.totalorder %s22, 1
      %p110 = por %p108, %p109
      %p111 = scmp.ne.s32.totalorder %s102, %s103
      %p112 = scmp.eq.s32.totalorder %s22, 0
      %p113 = por %p111, %p112
      %p114 = scmp.ne.s32.totalorder %s102, %s103
      %p115 = scmp.eq.s32.totalorder %s23, 1
      %p116 = por %p114, %p115
      %p118 = scmp.ne.s32.totalorder %s103, %s117
      %p119 = scmp.eq.s32.totalorder %s23, 0
      %p120 = por %p118, %p119
      %s121 = ssub.s32 %s24, %s43
      %s122 = ssub.s32 %s25, %s39
      %s123 = sor.u32 %s121, %s122
      %p124 = scmp.eq.s32.totalorder %s123, 0
      %s126 = sadd.s32 %s125, 1
      %s127 = scalar_select %p124, %s125, %s126
      %p130 = pneg %p124
      %p131 = scmp.eq.s32.totalorder %s17, 1
      %p132 = por %p130, %p131
      %p133 = scmp.ne.s32.totalorder %s125, %s128
      %p134 = scmp.eq.s32.totalorder %s17, 0
      %p135 = por %p133, %p134
      %p136 = scmp.ne.s32.totalorder %s125, %s128
      %p137 = scmp.eq.s32.totalorder %s22, 1
      %p138 = por %p136, %p137
      %p139 = scmp.ne.s32.totalorder %s128, %s129
      %p140 = scmp.eq.s32.totalorder %s22, 0
      %p141 = por %p139, %p140
      %p142 = scmp.ne.s32.totalorder %s128, %s129
      %p143 = scmp.eq.s32.totalorder %s23, 1
      %p144 = por %p142, %p143
      %p146 = scmp.ne.s32.totalorder %s129, %s145
      %p147 = scmp.eq.s32.totalorder %s23, 0
      %p148 = por %p146, %p147
      %s149 = ssub.s32 %s24, %s43
      %s150 = ssub.s32 %s25, %s39
      %s151 = sor.u32 %s149, %s150
      %p152 = scmp.eq.s32.totalorder %s151, 0
      %s154 = sadd.s32 %s153, 1
      %s155 = scalar_select %p152, %s153, %s154
      %p158 = pneg %p152
      %p159 = scmp.eq.s32.totalorder %s17, 1
      %p160 = por %p158, %p159
      %p161 = scmp.ne.s32.totalorder %s153, %s156
      %p162 = scmp.eq.s32.totalorder %s17, 0
      %p163 = por %p161, %p162
      %p164 = scmp.ne.s32.totalorder %s153, %s156
      %p165 = scmp.eq.s32.totalorder %s22, 1
      %p166 = por %p164, %p165
      %p167 = scmp.ne.s32.totalorder %s156, %s157
      %p168 = scmp.eq.s32.totalorder %s22, 0
      %p169 = por %p167, %p168
      %p170 = scmp.ne.s32.totalorder %s156, %s157
      %p171 = scmp.eq.s32.totalorder %s23, 1
      %p172 = por %p170, %p171
      %p174 = scmp.ne.s32.totalorder %s157, %s173
      %p175 = scmp.eq.s32.totalorder %s23, 0
      %p176 = por %p174, %p175
      %p177 = scmp.le.s32.totalorder 1, %s17
      %p178 = scmp.lt.s32.totalorder %s17, 3
      %p179 = pnand %p177, %p178
      %p180 = pneg %p179
      // Predicated region
      $region9: #{tpu_custom_call.1} parent=5 // pred_check
        _
      $region10: #{tpu_custom_call.1} parent=5 // pred_check_branch
        %182 = sbr.rel (%p179) target = $region12
      $region11: #{tpu_custom_call.1} parent=5 // pred_region
        %s183 = ssub.s32 %s17, 1
        // Predicated region
        $region13: #{tpu_custom_call.1} parent=11 // pred_check
          %p184 = pneg %p92
        $region14: #{tpu_custom_call.1} parent=11 // pred_check_branch
          %186 = sbr.rel (%p184) target = $region16
        $region15: #{tpu_custom_call.1} parent=11 // pred_region
          %p187 = scmp.lt.s32.totalorder %s29, 0
          %s188 = scalar_select %p187, %s29, 0
          %s189 = smul.addr %s188, 8
          %s190 = scalar_lea.vmem %s1, %s189
        $region16: #{tpu_custom_call.1} parent=11 // pred_fallthru
          _
        // Predicated region
        $region17: #{tpu_custom_call.1} parent=11 // pred_check
          %p191 = pneg %p113
        $region18: #{tpu_custom_call.1} parent=11 // pred_check_branch
          %193 = sbr.rel (%p191) target = $region20
        $region19: #{tpu_custom_call.1} parent=11 // pred_region
          _
        $region20: #{tpu_custom_call.1} parent=11 // pred_fallthru
          _
      $region12: #{tpu_custom_call.1} parent=5 // pred_fallthru
        _
      %p194 = scmp.lt.s32.totalorder %s17, 2
      // Predicated region
      $region21: #{tpu_custom_call.1} parent=5 // pred_check
        %p195 = pneg %p194
      $region22: #{tpu_custom_call.1} parent=5 // pred_check_branch
        %197 = sbr.rel (%p195) target = $region24
      $region23: #{tpu_custom_call.1} parent=5 // pred_region
        // Predicated region
        $region25: #{tpu_custom_call.1} parent=23 // pred_check
          %p198 = pneg %p60
        $region26: #{tpu_custom_call.1} parent=23 // pred_check_branch
          %200 = sbr.rel (%p198) target = $region28
        $region27: #{tpu_custom_call.1} parent=23 // pred_region
          %s201 = smul.u32 5, %s26
          %s202 = smul.u32 2, %s25
          %p203 = scmp.lt.s32.totalorder %s24, 1
          %s204 = scalar_select %p203, %s24, 1
          %p205 = scmp.lt.s32.totalorder %s201, 4
          %s206 = scalar_select %p205, %s201, 4
          %p207 = scmp.lt.s32.totalorder %s202, 1
          %s208 = scalar_select %p207, %s202, 1
          %s209 = smul.addr %s206, 2
          %s210 = sadd.s32 %s208, %s209
          %s211 = smul.addr %s204, 10
          %s212 = sadd.s32 %s210, %s211
          %s213 = smul.addr %s212, 8
          %s214 = scalar_lea.vmem %s0, %s213
          %s215 = smul.u32 5, %s26
          %s216 = smul.u32 2, %s25
        $region28: #{tpu_custom_call.1} parent=23 // pred_fallthru
          _
      $region24: #{tpu_custom_call.1} parent=5 // pred_fallthru
        _
      %p217 = scmp.le.s32.totalorder 1, %s17
      %p218 = scmp.lt.s32.totalorder %s17, 3
      %p219 = pnand %p217, %p218
      %p220 = pneg %p219
      // Predicated region
      $region29: #{tpu_custom_call.1} parent=5 // pred_check
        _
      $region30: #{tpu_custom_call.1} parent=5 // pred_check_branch
        %222 = sbr.rel (%p219) target = $region32
      $region31: #{tpu_custom_call.1} parent=5 // pred_region
        %s223 = ssub.s32 %s17, 1
        %s224 = smul.u32 5, %s29
        %s225 = smul.u32 2, %s28
        %p226 = scmp.lt.s32.totalorder %s27, 1
        %s227 = scalar_select %p226, %s27, 1
        %p228 = scmp.lt.s32.totalorder %s224, 4
        %s229 = scalar_select %p228, %s224, 4
        %p230 = scmp.lt.s32.totalorder %s225, 1
        %s231 = scalar_select %p230, %s225, 1
        %s232 = smul.addr %s229, 2
        %s233 = sadd.s32 %s231, %s232
        %s234 = smul.addr %s227, 10
        %s235 = sadd.s32 %s233, %s234
        %s236 = smul.addr %s235, 8
        %s237 = scalar_lea.vmem %s0, %s236
        %p238 = pneg %p66
        %p239 = pneg %p63
        %p240 = scmp.lt.s32.totalorder %s29, 0
        %s241 = scalar_select %p240, %s29, 0
        %s242 = smul.addr %s241, 8
        %s243 = scalar_lea.vmem %s1, %s242
        %p244 = pneg %p92
        %p245 = pneg %p89
        %p246 = pneg %p113
        %p247 = pneg %p110
        %p248 = pneg %p141
        %p249 = pneg %p138
        %s250 = sand.u32 %s128, 1
        %s251 = scalar_lea.sflag [#allocation4], %s250
        %s252 = sand.u32 %s128, 1
        %s253 = smul.addr %s252, 16
        %s254 = scalar_lea.vmem [#allocation3], %s253
        %p255 = pneg %p169
        %p256 = pneg %p166
        %s257 = sand.u32 %s156, 1
        %s258 = scalar_lea.sflag [#allocation6], %s257
        %s259 = sand.u32 %s156, 1
        %s260 = smul.addr %s259, 2
        %s261 = scalar_lea.vmem [#allocation5], %s260
        %s262 = smul.u32 5, %s29
        %s263 = smul.u32 2, %s28
        %p264 = scmp.lt.s32.totalorder %s27, 1
        %s265 = scalar_select %p264, %s27, 1
        %p266 = scmp.lt.s32.totalorder %s262, 4
        %s267 = scalar_select %p266, %s262, 4
        %p268 = scmp.lt.s32.totalorder %s263, 1
        %s269 = scalar_select %p268, %s263, 1
        %s270 = smul.addr %s267, 2
        %s271 = sadd.s32 %s269, %s270
        %s272 = smul.addr %s265, 10
        %s273 = sadd.s32 %s271, %s272
        %s274 = smul.addr %s273, 8
        %s275 = scalar_lea.vmem %s0, %s274
        %s276 = smul.u32 5, %s29
        %s277 = smul.u32 2, %s28
        %p278 = scmp.lt.s32.totalorder %s29, 0
        %s279 = scalar_select %p278, %s29, 0
        %s280 = smul.addr %s279, 8
        %s281 = scalar_lea.vmem %s1, %s280
        %s282 = smul.u32 2, %s28
        %p283 = scmp.eq.s32.totalorder %s29, 0
        // Predicated region
        $region33: #{tpu_custom_call.1} parent=31 // pred_check
          %p284 = pneg %p283
        $region34: #{tpu_custom_call.1} parent=31 // pred_check_branch
          %286 = sbr.rel (%p284) target = $region36
        $region35: #{tpu_custom_call.1} parent=31 // pred_region
          %287 = vst [vmem:[#allocation2] sm:$0xff] 0.0
          %288 = vst [vmem:[#allocation2 + $0x8] sm:$0xff] 0.0
        $region36: #{tpu_custom_call.1} parent=31 // pred_fallthru
          _
        %v289 = vld [vmem:[#allocation2] sm:$0xff]
        %v290 = vld [vmem:[#allocation2 + $0x8] sm:$0xff]
        %v291 = vld [vmem:[%s281] sm:$0xff]
        %v292 = vld [vmem:[%s275] sm:$0xff]
        %v293 = vld [vmem:[%s275 + $0x8] sm:$0xff]
        %v294 = vld [vmem:[%s275 + $0x10] sm:$0xff]
        %v295 = vld [vmem:[%s275 + $0x18] sm:$0xff]
        %v296 = vld [vmem:[%s275 + $0x20] sm:$0xff]
        %v297 = vld [vmem:[%s275 + $0x28] sm:$0xff]
        %v298 = vld [vmem:[%s275 + $0x30] sm:$0xff]
        %v299 = vld [vmem:[%s275 + $0x38] sm:$0xff]
        %v300 = vld [vmem:[%s275 + $0x40] sm:$0xf]
        %v301 = vld [vmem:[%s275 + $0x48] sm:$0xf]
        %vm302 = vcmask 293888
        %v304 = vsel %vm302, %v291, 0
        %vm306 = vcmask 1043456
        %v308 = vsel %vm306, %v300, 0
        %v311 = vsel %vm306, %v301, 0
        %313 = vmatprep.subr.mxu0 %v293
        %314 = vmatpush1.msra.mxu0 %v292
        %315 = vmatprep.subr.mxu0 %v295
        %316 = vmatpush1.msra.mxu0 %v294
        %317 = vmatprep.subr.mxu0 %v297
        %318 = vmatpush1.msra.mxu0 %v296
        %319 = vmatprep.subr.mxu0 %v299
        %320 = vmatpush1.msra.mxu0 %v298
        %321 = vmatprep.subr.mxu0 %v311
        %322 = vmatpush1.msra.mxu0 %v308
        %323 = vmatprep.subr.mxu0 0.0
        %324 = vmatpush1.msra.mxu0 0.0
        %325 = vmatprep.subr.mxu0 0.0
        %326 = vmatpush1.msra.mxu0 0.0
        %327 = vmatprep.subr.mxu0 0.0
        %328 = vmatpush1.msra.mxu0 0.0
        %329 = vmatprep.subr.mxu0 0.0
        %330 = vmatpush1.msra.mxu0 0.0
        %331 = vmatprep.subr.mxu0 0.0
        %332 = vmatpush1.msra.mxu0 0.0
        %333 = vmatprep.subr.mxu0 0.0
        %334 = vmatpush1.msra.mxu0 0.0
        %335 = vmatprep.subr.mxu0 0.0
        %336 = vmatpush1.msra.mxu0 0.0
        %337 = vmatprep.subr.mxu0 0.0
        %338 = vmatpush1.msra.mxu0 0.0
        %339 = vmatprep.subr.mxu0 0.0
        %340 = vmatpush1.msra.mxu0 0.0
        %341 = vmatprep.subr.mxu0 0.0
        %342 = vmatpush1.msra.mxu0 0.0
        %343 = vmatprep.subr.mxu0 0.0
        %344 = vmatpush1.msra.mxu0 0.0
        %345 = vmatprep.subr.mxu0 0.0
        %346 = vmatpush1.msra.mxu0 0.0
        %347 = vmatprep.subr.mxu0 0.0
        %348 = vmatpush1.msra.mxu0 0.0
        %349 = vmatprep.subr.mxu0 0.0
        %350 = vmatpush1.msra.mxu0 0.0
        %351 = vmatprep.subr.mxu0 0.0
        %352 = vmatpush1.msra.mxu0 0.0
        %353 = vmatprep.subr.mxu0 0.0
        %354 = vmatpush1.msra.mxu0 0.0
        %355 = vmatprep.subr.mxu0 0.0
        %356 = vmatpush1.msra.mxu0 0.0
        %357 = vmatprep.subr.mxu0 0.0
        %358 = vmatpush1.msra.mxu0 0.0
        %359 = vmatprep.subr.mxu0 0.0
        %360 = vmatpush1.msra.mxu0 0.0
        %361 = vmatprep.subr.mxu0 0.0
        %362 = vmatpush1.msra.mxu0 0.0
        %363 = vmatprep.subr.mxu0 0.0
        %364 = vmatpush1.msra.mxu0 0.0
        %365 = vmatprep.subr.mxu0 0.0
        %366 = vmatpush1.msra.mxu0 0.0
        %367 = vmatprep.subr.mxu0 0.0
        %368 = vmatpush1.msra.mxu0 0.0
        %369 = vmatprep.subr.mxu0 0.0
        %370 = vmatpush1.msra.mxu0 0.0
        %371 = vmatprep.subr.mxu0 0.0
        %372 = vmatpush1.msra.mxu0 0.0
        %373 = vmatprep.subr.mxu0 0.0
        %374 = vmatpush1.msra.mxu0 0.0
        %375 = vmatprep.subr.mxu0 0.0
        %376 = vmatpush1.msra.mxu0 0.0
        %377 = vmatprep.mubr.f32.mxu0 0.0
        %378 = vmatmul.mubr.f32.gmra.mrb[0].mxu0 %v304
        %v379 = vpop.f32.mrb[0].mxu0
        %v380 = vadd.f32 0.0, %v379
        %v381 = vpop.f32.mrb[0].mxu0
        %v382 = vadd.f32 0.0, %v381
        %383 = vdwg.mxu0
        %v384 = vadd.f32 %v289, %v380
        %v385 = vadd.f32 %v290, %v382
        %386 = vst [vmem:[#allocation2] sm:$0xff] %v384
        %387 = vst [vmem:[#allocation2 + $0x8] sm:$0xff] %v385
        // Predicated region
        $region37: #{tpu_custom_call.1} parent=31 // pred_check
          %p388 = pneg %p283
        $region38: #{tpu_custom_call.1} parent=31 // pred_check_branch
          %390 = sbr.rel (%p388) target = $region40
        $region39: #{tpu_custom_call.1} parent=31 // pred_region
          %v391 = vld [vmem:[#allocation2] sm:$0xff]
          %v392 = vld [vmem:[#allocation2 + $0x8] sm:$0xff]
          %v393 = vld [vmem:[%s2] sm:$0xff]
          %395 = vset.pattern.permute.xlu0 0
          %396 = vperm.xlu0 %395, %v393
          %v397 = vpop.permute.xlu0 %396
          %v399 = vadd.f32 %v391, %v397
          %v400 = vadd.f32 %v392, %v397
          %401 = vst [vmem:[%s254] sm:$0xff] %v399
          %402 = vst [vmem:[%s254 + $0x8] sm:$0xff] %v400
          %s403 = smul.u32 %s28, 256
          %v404 = vlaneseq
          %v405 = vand.u32 %v404, 127
          %v406 = vadd.s32 %v405, 128
          %v407 = vstv %s403
          %v408 = vadd.s32 %v407, %v405
          %v409 = vadd.s32 %v407, %v406
          %vm410 = vcmp.lt.s32.totalorder %v408, 256
          %vm411 = vcmp.lt.s32.totalorder %v409, 256
          %v412 = vsel %vm410, 1, 0
          %v413 = vsel %vm411, 1, 0
          %vm414 = vcmp.eq.s32.totalorder %v412, 1
          %vm415 = vcmp.eq.s32.totalorder %v413, 1
          %v416 = vsel %vm414, %v399, 0.0
          %v417 = vsel %vm415, %v400, 0.0
          %v418 = vadd.f32 %v416, %v417
          %419 = vadd.xlane.f32.xlu0 %v418
          %v420 = vpop.xlane.xlu0 %419
          %v421 = vmul.f32 %v416, %v416
          %v422 = vmul.f32 %v417, %v417
          %v423 = vadd.f32 %v421, %v422
          %424 = vadd.xlane.f32.xlu0 %v423
          %v425 = vpop.xlane.xlu0 %424
          %v427 = vlaneseq
          %v428 = vshrl.u32 %v427, 7
          %v429 = vsub.s32 %v405, %v428
          %v430 = vrot.slane %v420, %v429
          %v433 = vlaneseq
          %v434 = vshrl.u32 %v433, 7
          %v435 = vsub.s32 %v405, %v434
          %v436 = vrot.slane %v425, %v435
          %vm438 = vcmask 1040384
          %v439 = vsel %vm438, %v430, %v436
          %vm440 = vcmask 58368
          %441 = vst.msk [vmem:[%s261] sm:$0x3] %vm440, %v439
        $region40: #{tpu_custom_call.1} parent=31 // pred_fallthru
          _
        %s442 = sand.u32 %s128, 1
        %s443 = scalar_lea.sflag [#allocation4], %s442
        %s444 = sand.u32 %s128, 1
        %s445 = smul.addr %s444, 16
        %s446 = scalar_lea.vmem [#allocation3], %s445
        %s447 = sand.u32 %s156, 1
        %s448 = scalar_lea.sflag [#allocation6], %s447
        %s449 = sand.u32 %s156, 1
        %s450 = smul.addr %s449, 2
        %s451 = scalar_lea.vmem [#allocation5], %s450
        // Predicated region
        $region41: #{tpu_custom_call.1} parent=31 // pred_check
          %p452 = pneg %p138
        $region42: #{tpu_custom_call.1} parent=31 // pred_check_branch
          %454 = sbr.rel (%p452) target = $region44
        $region43: #{tpu_custom_call.1} parent=31 // pred_region
          %s455 = smul.u32 2, %s28
          %s457 = ssub.s32 256, 256
          %458 = vsyncadd %s443, %s457
          %s459 = smul.addr %s27, 2
          %s460 = sadd.s32 %s455, %s459
          %s461 = smul.addr %s460, 128
          %s462 = scalar_lea.hbm %s3, %s461
          %s464 = sshll.u32 %s446, 4
          %s465 = int_to_ptr.vmem [resolvable:$true] %s464
          %467 = dma.vmem_to_hbm [thread:$0]  %s465, 256, %s462, %s443
        $region44: #{tpu_custom_call.1} parent=31 // pred_fallthru
          _
        // Predicated region
        $region45: #{tpu_custom_call.1} parent=31 // pred_check
          %p468 = pneg %p166
        $region46: #{tpu_custom_call.1} parent=31 // pred_check_branch
          %470 = sbr.rel (%p468) target = $region48
        $region47: #{tpu_custom_call.1} parent=31 // pred_region
          %s472 = ssub.s32 32, 32
          %473 = vsyncadd %s448, %s472
          %s474 = sadd.s32 %s28, %s27
          %s475 = smul.addr %s474, 32
          %s476 = scalar_lea.hbm %s4, %s475
          %s478 = sshll.u32 %s451, 4
          %s479 = int_to_ptr.vmem [resolvable:$true] %s478
          %481 = dma.vmem_to_hbm [thread:$0]  %s479, 32, %s476, %s448
        $region48: #{tpu_custom_call.1} parent=31 // pred_fallthru
          _
      $region32: #{tpu_custom_call.1} parent=5 // pred_fallthru
        _
      %p482 = scmp.le.s32.totalorder 2, %s17
      // Predicated region
      $region49: #{tpu_custom_call.1} parent=5 // pred_check
        %p483 = pneg %p482
      $region50: #{tpu_custom_call.1} parent=5 // pred_check_branch
        %485 = sbr.rel (%p483) target = $region52
      $region51: #{tpu_custom_call.1} parent=5 // pred_region
        %s486 = ssub.s32 %s17, 2
        // Predicated region
        $region53: #{tpu_custom_call.1} parent=51 // pred_check
          %p487 = pneg %p144
        $region54: #{tpu_custom_call.1} parent=51 // pred_check_branch
          %489 = sbr.rel (%p487) target = $region56
        $region55: #{tpu_custom_call.1} parent=51 // pred_region
          %s490 = sand.u32 %s129, 1
          %s491 = scalar_lea.sflag [#allocation4], %s490
          %s492 = sand.u32 %s129, 1
          %s493 = smul.addr %s492, 16
          %s494 = scalar_lea.vmem [#allocation3], %s493
          %495 = dma.done %s491, 256
        $region56: #{tpu_custom_call.1} parent=51 // pred_fallthru
          _
        // Predicated region
        $region57: #{tpu_custom_call.1} parent=51 // pred_check
          %p496 = pneg %p172
        $region58: #{tpu_custom_call.1} parent=51 // pred_check_branch
          %498 = sbr.rel (%p496) target = $region60
        $region59: #{tpu_custom_call.1} parent=51 // pred_region
          %s499 = sand.u32 %s157, 1
          %s500 = scalar_lea.sflag [#allocation6], %s499
          %s501 = sand.u32 %s157, 1
          %s502 = smul.addr %s501, 2
          %s503 = scalar_lea.vmem [#allocation5], %s502
          %504 = dma.done %s500, 32
        $region60: #{tpu_custom_call.1} parent=51 // pred_fallthru
          _
      $region52: #{tpu_custom_call.1} parent=5 // pred_fallthru
        _
    $region6: #{tpu_custom_call.1} parent=1 // loop_footer
      %s21 = sadd.s32 1, %s17
    $region7: #{tpu_custom_call.1} parent=1 // loop_footer_branch
      %16 = sbr.rel target = $region3
    $region8: #{tpu_custom_call.1} parent=1 // loop_exit
      _
    %505 = vsyncpa [#allocation4], 1
    %s506 = scalar_lea.sflag [#allocation4], 1
    %507 = vsyncpa %s506, 1
    %508 = vsyncpa [#allocation6], 1
    %s509 = scalar_lea.sflag [#allocation6], 1
    %510 = vsyncpa %s509, 1

</llo_original>
